<compile_context>
chip_gen: v7x
topology: tpu7x:2x2x1
jax: 0.10.0
libtpu: 0.0.40
codegen_flags: <defaults>
</compile_context>

<pallas_src>
import jax
import jax.numpy as jnp
from jax.experimental import pallas as pl
from jax.experimental.pallas import tpu as pltpu


# -----------------------------------------------------------------------------
# Kernel
# -----------------------------------------------------------------------------
def _logrelu_kernel(x_ref, o_ref):
    v = x_ref[...].astype(jnp.float32)
    # log(1 + relu(x))
    o_ref[...] = jnp.log1p(jnp.maximum(v, 0.0)).astype(o_ref.dtype)


# -----------------------------------------------------------------------------
# Helpers
# -----------------------------------------------------------------------------
def _round_up(a, b):
    return -(-a // b) * b


def _reference(x):
    return jnp.log1p(jnp.maximum(x.astype(jnp.float32), 0.0)).astype(x.dtype)


# -----------------------------------------------------------------------------
# Wrapper
# -----------------------------------------------------------------------------
def logrelu_forward(x, *, target_block_bytes=2 << 20, min_pallas_bytes=1 << 20):
    """Elementwise log(1 + relu(x)) for any input shape (forward of myact_LogReLU)."""
    orig_shape = x.shape
    orig_dtype = x.dtype
    itemsize = x.dtype.itemsize
    n = int(x.size)

    # --- small-input fast path: Pallas launch/step overhead dominates below ~1 MiB and
    #     XLA fuses this elementwise op for free at such sizes.
    if n == 0 or n * itemsize < min_pallas_bytes:
        return _reference(x)

    # --- copy-free 2-D factorization (rows, lanes) with rows * lanes == n (no padding).
    rows = lanes = None
    for lw in (1024, 512, 256, 128):
        if n % lw == 0:
            rows, lanes = n // lw, lw            # lane-dense flatten
            break
    if lanes is None:
        # Collapse trailing dims of the original shape (exact, free reshape).
        lanes, k = 1, len(orig_shape)
        while k > 1 and lanes < 256:
            k -= 1
            lanes *= int(orig_shape[k])
        rows = n // lanes
        if lanes < 128:
            # Degenerate layout (can't build a reasonable lane width) -> plain XLA.
            return _reference(x)

    x2d = x.reshape(rows, lanes)

    # --- lane (last-dim) block: multiple of 128, or the full (possibly ragged) dim.
    if lanes % 128 == 0:
        cb = min(lanes, 1024)
    elif lanes <= 2048:
        cb = lanes                               # full-dim block (allowed even if ragged)
    else:
        cb = 1024                                # boundary column block gets masked
    cb_pad = _round_up(cb, 128)

    # --- row (sublane) block: dtype sublane multiple, ~target_block_bytes, and small
    #     enough that the grid has >= ~8 steps for v7x 2-TensorCore balance.
    sub = max(8, 32 // itemsize)                 # 8 for f32, 16 for bf16, 32 for int8/fp8
    rt_bytes = max(sub, target_block_bytes // (cb_pad * itemsize))
    rt_balance = max(sub, -(-rows // 8))
    rt = min(rt_bytes, rt_balance, rows)
    rt = max(sub, (rt // sub) * sub)
    if rt > rows:                                # tiny row count: full-dim block is legal
        rt = rows

    grid = (pl.cdiv(rows, rt), pl.cdiv(lanes, cb))
    index_map = lambda i, j: (i, j)

    rt_pad = _round_up(rt, sub)
    block_bytes = rt_pad * cb_pad * itemsize
    # 3 input buffers + 2 output buffers + in-kernel f32 temporaries, with headroom;
    # capped at 24 MiB so it is safe on v7x (64 MiB physical / 32 MiB scoped per TC).
    vmem_limit = int(min(24 << 20, max(4 << 20, 8 * block_bytes)))

    def _call(pipeline_mode):
        spec_kwargs = {} if pipeline_mode is None else {"pipeline_mode": pipeline_mode}
        in_spec = pl.BlockSpec((rt, cb), index_map, **spec_kwargs)
        out_spec = pl.BlockSpec((rt, cb), index_map)
        return pl.pallas_call(
            _logrelu_kernel,
            out_shape=jax.ShapeDtypeStruct((rows, lanes), orig_dtype),
            grid_spec=pltpu.PrefetchScalarGridSpec(
                num_scalar_prefetch=0,
                grid=grid,
                in_specs=[in_spec],
                out_specs=out_spec,
            ),
            compiler_params=pltpu.CompilerParams(
                dimension_semantics=("parallel", "parallel"),  # megacore sharding on v7x
                vmem_limit_bytes=vmem_limit,
            ),
            cost_estimate=pl.CostEstimate(
                flops=n, transcendentals=n, bytes_accessed=2 * n * itemsize
            ),
        )(x2d)

    if hasattr(pl, "Buffered"):
        try:
            return _call(pl.Buffered(3)).reshape(orig_shape)
        except Exception:
            pass  # fall back to default double-buffering
    return _call(None).reshape(orig_shape)


# -----------------------------------------------------------------------------
if __name__ == "__main__":
    key = jax.random.PRNGKey(0)
    k1, k2, k3 = jax.random.split(key, 3)

    # 1) Small activation (2,4,16,16) f32: exercises the small-input fast path.
    x_small = jax.random.normal(k1, (2, 4, 16, 16), dtype=jnp.float32)
    out_small = jax.block_until_ready(logrelu_forward(x_small))
    ref_small = _reference(x_small)
    assert out_small.shape == x_small.shape and out_small.dtype == x_small.dtype
    assert jnp.allclose(out_small, ref_small, atol=1e-6, rtol=1e-6), "small f32 mismatch"

    # 2) Medium lane-dense case (8,64,32,32) f32 -> (512,1024) slab, grid=(8,1), no padding.
    x_med = jax.random.normal(k2, (8, 64, 32, 32), dtype=jnp.float32)
    out_med = jax.block_until_ready(logrelu_forward(x_med))
    ref_med = _reference(x_med)
    assert out_med.shape == x_med.shape and out_med.dtype == x_med.dtype
    assert jnp.allclose(out_med, ref_med, atol=1e-6, rtol=1e-6), "medium f32 mismatch"

    # 3) Ragged bf16 case (3,1000,257): trailing-dim collapse to (3000,257), masked final
    #    row block, no pad / slice HBM round trips.
    x_rag = jax.random.normal(k3, (3, 1000, 257), dtype=jnp.bfloat16)
    out_rag = jax.block_until_ready(logrelu_forward(x_rag))
    ref_rag = _reference(x_rag)
    assert out_rag.shape == x_rag.shape and out_rag.dtype == x_rag.dtype
    assert jnp.allclose(out_rag.astype(jnp.float32), ref_rag.astype(jnp.float32),
                        atol=2e-2, rtol=2e-2), "ragged bf16 mismatch"

    print("KERNEL_OK")
</pallas_src>

<mosaic_0001>
module attributes {stable_mosaic.version = 11 : i64} {
  func.func @_logrelu_kernel(%arg0: i32, %arg1: i32, %arg2: memref<64x1024xf32, #tpu.memory_space<vmem>>, %arg3: memref<64x1024xf32, #tpu.memory_space<vmem>>) attributes {dimension_semantics = [#tpu.dimension_semantics<parallel>, #tpu.dimension_semantics<parallel>], iteration_bounds = array<i64: 8, 1>, scalar_prefetch = 0 : i64, scratch_operands = 0 : i64, tpu.core_type = #tpu.core_type<tc>, window_params = [{transform_indices = @transform_0, window_bounds = array<i64: 64, 1024>}, {transform_indices = @transform_1, window_bounds = array<i64: 64, 1024>}]} {
    %c0 = arith.constant 0 : index
    %c0_0 = arith.constant 0 : index
    %0 = vector.load %arg2[%c0, %c0_0] : memref<64x1024xf32, #tpu.memory_space<vmem>>, vector<64x1024xf32>
    %cst = arith.constant 0.000000e+00 : f32
    %1 = vector.broadcast %cst : f32 to vector<64x1024xf32>
    %2 = arith.maximumf %0, %1 : vector<64x1024xf32>
    %3 = math.log1p %2 : vector<64x1024xf32>
    %c0_1 = arith.constant 0 : index
    %c0_2 = arith.constant 0 : index
    %4 = vector.load %arg3[%c0_1, %c0_2] : memref<64x1024xf32, #tpu.memory_space<vmem>>, vector<64x1024xf32>
    tpu.vector_store %arg3[%c0_1, %c0_2], %3 {strides = array<i32>} : memref<64x1024xf32, #tpu.memory_space<vmem>>, vector<64x1024xf32>,
    return
  }
  func.func @transform_0(%arg0: i32, %arg1: i32) -> (i32, i32) {
    %c0_i32 = arith.constant 0 : i32
    return %arg0, %arg1 : i32, i32
  }
  func.func @transform_1(%arg0: i32, %arg1: i32) -> (i32, i32) {
    %c0_i32 = arith.constant 0 : i32
    return %arg0, %arg1 : i32, i32
  }
}

</mosaic_0001>

<llo_original>
// kernel: tpu_custom_call.1
$region0: #{tpu_custom_call.1}
  #allocation0 [shape = 'u32[]', space=smem, size = 0x4, offset = 0x4, fixed_abs, tag = 'smem constant byte address 0x4 - core index']
  #allocation1 [shape = 'u32[144,128]{1,0:T(1,128)}', space=vmem, size = 0x12000, scoped, tag = 'internal scratch']
  %s0 = inlined_call_operand.hbm [shape: f32[512,1024], index: 0, kind: input, shape index: {}]
  %s1 = inlined_call_operand.hbm [shape: f32[512,1024], index: 1, kind: output, shape index: {}]
  %s2 = sld [smem:[#allocation0]]
  $region41: #{tpu_custom_call.1} parent=0
    _
  %s4 = ssub.s32 1, %s2
  %s5 = scalar_select 0, %s4, %s2
  $region1: #{tpu_custom_call.1} parent=0
    #allocation2 [shape = 'u8[524288]{0}', space=vmem, size = 0x80000, scoped, tag = 'input window, operand 0']
    #allocation3 [shape = 's32[2]{0}', space=sflag, size = 0x8, scoped, tag = 'scoped memory for tpu_custom_call.1']
    #allocation4 [shape = 's32[2]{0}', space=sflag, size = 0x8, scoped, tag = 'scoped memory for tpu_custom_call.1']
    #allocation5 [shape = 'u8[524288]{0}', space=vmem, size = 0x80000, scoped, tag = 'output window, operand 0']
    %6 = vsyncpa [#allocation3], 0
    %s7 = scalar_lea.sflag [#allocation3], 1
    %8 = vsyncpa %s7, 0
    %9 = vsyncpa [#allocation4], 0
    %s10 = scalar_lea.sflag [#allocation4], 1
    %11 = vsyncpa %s10, 0
    loop: start=0, step=1, limit=10
    $region2: #{tpu_custom_call.1} parent=1 // loop_pre_header
      _
    $region3: #{tpu_custom_call.1} parent=1 // loop_header
      %s13 = sphi 0, %s17
      %p14 = scmp.ge.s32.totalorder %s13, 10
      %s20 = sphi 0, %s32
      %s21 = sphi 0, %s28
      %s22 = sphi 0, %s20
      %s23 = sphi 0, %s21
      %s24 = sphi 0, %s22
      %s25 = sphi 0, %s23
      %s37 = sphi 0, %s39
      %s40 = sphi 0, %s37
      %s41 = sphi 0, %s40
      %s57 = sphi 0, %s41
      %s65 = sphi 0, %s67
      %s68 = sphi 0, %s65
      %s69 = sphi 0, %s68
      %s85 = sphi 0, %s69
    $region4: #{tpu_custom_call.1} parent=1 // loop_header_branch
      %16 = sbr.rel (%p14) target = $region8
    $region5: #{tpu_custom_call.1} parent=1 // loop_body
      %s18 = ssub.s32 %s13, 1
      %s19 = ssub.s32 %s13, 2
      %s26 = sadd.s32 1, %s21
      %p27 = scmp.ge.s32.totalorder %s26, 1
      %s28 = scalar_select %p27, 0, %s26
      %s29 = sadd.s32 1, %s20
      %s30 = scalar_select %p27, %s29, %s20
      %p31 = scmp.ge.s32.totalorder %s30, 8
      %s32 = scalar_select %p31, 0, %s30
      %s33 = ssub.s32 %s20, %s32
      %s34 = ssub.s32 %s21, %s28
      %s35 = sor.u32 %s33, %s34
      %p36 = scmp.eq.s32.totalorder %s35, 0
      %s38 = sadd.s32 %s37, 1
      %s39 = scalar_select %p36, %s37, %s38
      %p42 = pneg %p36
      %p43 = scmp.eq.s32.totalorder %s13, 7
      %p44 = por %p42, %p43
      %p45 = scmp.ne.s32.totalorder %s37, %s40
      %p46 = scmp.eq.s32.totalorder %s13, 0
      %p47 = por %p45, %p46
      %p48 = scmp.ne.s32.totalorder %s37, %s40
      %p49 = scmp.eq.s32.totalorder %s18, 7
      %p50 = por %p48, %p49
      %p51 = scmp.ne.s32.totalorder %s40, %s41
      %p52 = scmp.eq.s32.totalorder %s18, 0
      %p53 = por %p51, %p52
      %p54 = scmp.ne.s32.totalorder %s40, %s41
      %p55 = scmp.eq.s32.totalorder %s19, 7
      %p56 = por %p54, %p55
      %p58 = scmp.ne.s32.totalorder %s41, %s57
      %p59 = scmp.eq.s32.totalorder %s19, 0
      %p60 = por %p58, %p59
      %s61 = ssub.s32 %s20, %s32
      %s62 = ssub.s32 %s21, %s28
      %s63 = sor.u32 %s61, %s62
      %p64 = scmp.eq.s32.totalorder %s63, 0
      %s66 = sadd.s32 %s65, 1
      %s67 = scalar_select %p64, %s65, %s66
      %p70 = pneg %p64
      %p71 = scmp.eq.s32.totalorder %s13, 7
      %p72 = por %p70, %p71
      %p73 = scmp.ne.s32.totalorder %s65, %s68
      %p74 = scmp.eq.s32.totalorder %s13, 0
      %p75 = por %p73, %p74
      %p76 = scmp.ne.s32.totalorder %s65, %s68
      %p77 = scmp.eq.s32.totalorder %s18, 7
      %p78 = por %p76, %p77
      %p79 = scmp.ne.s32.totalorder %s68, %s69
      %p80 = scmp.eq.s32.totalorder %s18, 0
      %p81 = por %p79, %p80
      %p82 = scmp.ne.s32.totalorder %s68, %s69
      %p83 = scmp.eq.s32.totalorder %s19, 7
      %p84 = por %p82, %p83
      %p86 = scmp.ne.s32.totalorder %s69, %s85
      %p87 = scmp.eq.s32.totalorder %s19, 0
      %p88 = por %p86, %p87
      %p89 = scmp.le.s32.totalorder 1, %s13
      %p90 = scmp.lt.s32.totalorder %s13, 9
      %p91 = pnand %p89, %p90
      %p92 = pneg %p91
      // Predicated region
      $region9: #{tpu_custom_call.1} parent=5 // pred_check
        _
      $region10: #{tpu_custom_call.1} parent=5 // pred_check_branch
        %94 = sbr.rel (%p91) target = $region12
      $region11: #{tpu_custom_call.1} parent=5 // pred_region
        %s95 = ssub.s32 %s13, 1
      $region12: #{tpu_custom_call.1} parent=5 // pred_fallthru
        _
      %p96 = scmp.lt.s32.totalorder %s13, 8
      // Predicated region
      $region13: #{tpu_custom_call.1} parent=5 // pred_check
        %p97 = pneg %p96
      $region14: #{tpu_custom_call.1} parent=5 // pred_check_branch
        %99 = sbr.rel (%p97) target = $region16
      $region15: #{tpu_custom_call.1} parent=5 // pred_region
        // Predicated region
        $region17: #{tpu_custom_call.1} parent=15 // pred_check
          %p100 = pneg %p47
        $region18: #{tpu_custom_call.1} parent=15 // pred_check_branch
          %102 = sbr.rel (%p100) target = $region20
        $region19: #{tpu_custom_call.1} parent=15 // pred_region
          %s103 = sand.u32 %s37, 1
          %s104 = scalar_lea.sflag [#allocation3], %s103
          %s105 = sand.u32 %s37, 1
          %s106 = smul.addr %s105, 512
          %s107 = scalar_lea.vmem [#allocation2], %s106
          %s108 = smul.u32 8, %s20
          %s109 = smul.u32 8, %s21
          %s111 = ssub.s32 8192, 8192
          %112 = vsyncadd %s104, %s111
          %s113 = smul.addr %s108, 8
          %s114 = sadd.s32 %s109, %s113
          %s115 = smul.addr %s114, 128
          %s116 = scalar_lea.hbm %s0, %s115
          %s117 = sshll.u32 %s107, 4
          %s118 = int_to_ptr.vmem [resolvable:$true] %s117
          %123 = dma.hbm_to_vmem [thread:$0]  %s116, 8192, %s118, %s104, 1024, 1024, 64
        $region20: #{tpu_custom_call.1} parent=15 // pred_fallthru
          _
      $region16: #{tpu_custom_call.1} parent=5 // pred_fallthru
        _
      %p124 = scmp.le.s32.totalorder 1, %s13
      %p125 = scmp.lt.s32.totalorder %s13, 9
      %p126 = pnand %p124, %p125
      %p127 = pneg %p126
      // Predicated region
      $region21: #{tpu_custom_call.1} parent=5 // pred_check
        _
      $region22: #{tpu_custom_call.1} parent=5 // pred_check_branch
        %129 = sbr.rel (%p126) target = $region24
      $region23: #{tpu_custom_call.1} parent=5 // pred_region
        %s130 = ssub.s32 %s13, 1
        %s131 = sand.u32 %s40, 1
        %s132 = scalar_lea.sflag [#allocation3], %s131
        %s133 = sand.u32 %s40, 1
        %s134 = smul.addr %s133, 512
        %s135 = scalar_lea.vmem [#allocation2], %s134
        // Predicated region
        $region25: #{tpu_custom_call.1} parent=23 // pred_check
          %p136 = pneg %p53
        $region26: #{tpu_custom_call.1} parent=23 // pred_check_branch
          %138 = sbr.rel (%p136) target = $region28
        $region27: #{tpu_custom_call.1} parent=23 // pred_region
          %139 = dma.done %s132, 8192
        $region28: #{tpu_custom_call.1} parent=23 // pred_fallthru
          _
        %s140 = sand.u32 %s40, 1
        %s141 = scalar_lea.sflag [#allocation3], %s140
        %s142 = sand.u32 %s40, 1
        %s143 = smul.addr %s142, 512
        %s144 = scalar_lea.vmem [#allocation2], %s143
        %p145 = pneg %p53
        %p146 = pneg %p50
        %p147 = pneg %p81
        %p148 = pneg %p78
        %s149 = sand.u32 %s68, 1
        %s150 = scalar_lea.sflag [#allocation4], %s149
        %s151 = sand.u32 %s68, 1
        %s152 = smul.addr %s151, 512
        %s153 = scalar_lea.vmem [#allocation5], %s152
        %s154 = smul.u32 8, %s22
        %s155 = smul.u32 8, %s23
        %s156 = smul.u32 8, %s22
        %s157 = smul.u32 8, %s23
        %v158 = vld [vmem:[%s135] sm:$0xff]
        %v159 = vld [vmem:[%s135 + $0x8] sm:$0xff]
        %v160 = vld [vmem:[%s135 + $0x10] sm:$0xff]
        %v161 = vld [vmem:[%s135 + $0x18] sm:$0xff]
        %v162 = vld [vmem:[%s135 + $0x20] sm:$0xff]
        %v163 = vld [vmem:[%s135 + $0x28] sm:$0xff]
        %v164 = vld [vmem:[%s135 + $0x30] sm:$0xff]
        %v165 = vld [vmem:[%s135 + $0x38] sm:$0xff]
        %v166 = vld [vmem:[%s135 + $0x40] sm:$0xff]
        %v167 = vld [vmem:[%s135 + $0x48] sm:$0xff]
        %v168 = vld [vmem:[%s135 + $0x50] sm:$0xff]
        %v169 = vld [vmem:[%s135 + $0x58] sm:$0xff]
        %v170 = vld [vmem:[%s135 + $0x60] sm:$0xff]
        %v171 = vld [vmem:[%s135 + $0x68] sm:$0xff]
        %v172 = vld [vmem:[%s135 + $0x70] sm:$0xff]
        %v173 = vld [vmem:[%s135 + $0x78] sm:$0xff]
        %v174 = vld [vmem:[%s135 + $0x80] sm:$0xff]
        %v175 = vld [vmem:[%s135 + $0x88] sm:$0xff]
        %v176 = vld [vmem:[%s135 + $0x90] sm:$0xff]
        %v177 = vld [vmem:[%s135 + $0x98] sm:$0xff]
        %v178 = vld [vmem:[%s135 + $0xa0] sm:$0xff]
        %v179 = vld [vmem:[%s135 + $0xa8] sm:$0xff]
        %v180 = vld [vmem:[%s135 + $0xb0] sm:$0xff]
        %v181 = vld [vmem:[%s135 + $0xb8] sm:$0xff]
        %v182 = vld [vmem:[%s135 + $0xc0] sm:$0xff]
        %v183 = vld [vmem:[%s135 + $0xc8] sm:$0xff]
        %v184 = vld [vmem:[%s135 + $0xd0] sm:$0xff]
        %v185 = vld [vmem:[%s135 + $0xd8] sm:$0xff]
        %v186 = vld [vmem:[%s135 + $0xe0] sm:$0xff]
        %v187 = vld [vmem:[%s135 + $0xe8] sm:$0xff]
        %v188 = vld [vmem:[%s135 + $0xf0] sm:$0xff]
        %v189 = vld [vmem:[%s135 + $0xf8] sm:$0xff]
        %v190 = vld [vmem:[%s135 + $0x100] sm:$0xff]
        %v191 = vld [vmem:[%s135 + $0x108] sm:$0xff]
        %v192 = vld [vmem:[%s135 + $0x110] sm:$0xff]
        %v193 = vld [vmem:[%s135 + $0x118] sm:$0xff]
        %v194 = vld [vmem:[%s135 + $0x120] sm:$0xff]
        %v195 = vld [vmem:[%s135 + $0x128] sm:$0xff]
        %v196 = vld [vmem:[%s135 + $0x130] sm:$0xff]
        %v197 = vld [vmem:[%s135 + $0x138] sm:$0xff]
        %v198 = vld [vmem:[%s135 + $0x140] sm:$0xff]
        %v199 = vld [vmem:[%s135 + $0x148] sm:$0xff]
        %v200 = vld [vmem:[%s135 + $0x150] sm:$0xff]
        %v201 = vld [vmem:[%s135 + $0x158] sm:$0xff]
        %v202 = vld [vmem:[%s135 + $0x160] sm:$0xff]
        %v203 = vld [vmem:[%s135 + $0x168] sm:$0xff]
        %v204 = vld [vmem:[%s135 + $0x170] sm:$0xff]
        %v205 = vld [vmem:[%s135 + $0x178] sm:$0xff]
        %v206 = vld [vmem:[%s135 + $0x180] sm:$0xff]
        %v207 = vld [vmem:[%s135 + $0x188] sm:$0xff]
        %v208 = vld [vmem:[%s135 + $0x190] sm:$0xff]
        %v209 = vld [vmem:[%s135 + $0x198] sm:$0xff]
        %v210 = vld [vmem:[%s135 + $0x1a0] sm:$0xff]
        %v211 = vld [vmem:[%s135 + $0x1a8] sm:$0xff]
        %v212 = vld [vmem:[%s135 + $0x1b0] sm:$0xff]
        %v213 = vld [vmem:[%s135 + $0x1b8] sm:$0xff]
        %v214 = vld [vmem:[%s135 + $0x1c0] sm:$0xff]
        %v215 = vld [vmem:[%s135 + $0x1c8] sm:$0xff]
        %v216 = vld [vmem:[%s135 + $0x1d0] sm:$0xff]
        %v217 = vld [vmem:[%s135 + $0x1d8] sm:$0xff]
        %v218 = vld [vmem:[%s135 + $0x1e0] sm:$0xff]
        %v219 = vld [vmem:[%s135 + $0x1e8] sm:$0xff]
        %v220 = vld [vmem:[%s135 + $0x1f0] sm:$0xff]
        %v221 = vld [vmem:[%s135 + $0x1f8] sm:$0xff]
        %v222 = vmax.f32 %v158, 0.0
        %v223 = vmax.f32 %v159, 0.0
        %v224 = vmax.f32 %v160, 0.0
        %v225 = vmax.f32 %v161, 0.0
        %v226 = vmax.f32 %v162, 0.0
        %v227 = vmax.f32 %v163, 0.0
        %v228 = vmax.f32 %v164, 0.0
        %v229 = vmax.f32 %v165, 0.0
        %v230 = vmax.f32 %v166, 0.0
        %v231 = vmax.f32 %v167, 0.0
        %v232 = vmax.f32 %v168, 0.0
        %v233 = vmax.f32 %v169, 0.0
        %v234 = vmax.f32 %v170, 0.0
        %v235 = vmax.f32 %v171, 0.0
        %v236 = vmax.f32 %v172, 0.0
        %v237 = vmax.f32 %v173, 0.0
        %v238 = vmax.f32 %v174, 0.0
        %v239 = vmax.f32 %v175, 0.0
        %v240 = vmax.f32 %v176, 0.0
        %v241 = vmax.f32 %v177, 0.0
        %v242 = vmax.f32 %v178, 0.0
        %v243 = vmax.f32 %v179, 0.0
        %v244 = vmax.f32 %v180, 0.0
        %v245 = vmax.f32 %v181, 0.0
        %v246 = vmax.f32 %v182, 0.0
        %v247 = vmax.f32 %v183, 0.0
        %v248 = vmax.f32 %v184, 0.0
        %v249 = vmax.f32 %v185, 0.0
        %v250 = vmax.f32 %v186, 0.0
        %v251 = vmax.f32 %v187, 0.0
        %v252 = vmax.f32 %v188, 0.0
        %v253 = vmax.f32 %v189, 0.0
        %v254 = vmax.f32 %v190, 0.0
        %v255 = vmax.f32 %v191, 0.0
        %v256 = vmax.f32 %v192, 0.0
        %v257 = vmax.f32 %v193, 0.0
        %v258 = vmax.f32 %v194, 0.0
        %v259 = vmax.f32 %v195, 0.0
        %v260 = vmax.f32 %v196, 0.0
        %v261 = vmax.f32 %v197, 0.0
        %v262 = vmax.f32 %v198, 0.0
        %v263 = vmax.f32 %v199, 0.0
        %v264 = vmax.f32 %v200, 0.0
        %v265 = vmax.f32 %v201, 0.0
        %v266 = vmax.f32 %v202, 0.0
        %v267 = vmax.f32 %v203, 0.0
        %v268 = vmax.f32 %v204, 0.0
        %v269 = vmax.f32 %v205, 0.0
        %v270 = vmax.f32 %v206, 0.0
        %v271 = vmax.f32 %v207, 0.0
        %v272 = vmax.f32 %v208, 0.0
        %v273 = vmax.f32 %v209, 0.0
        %v274 = vmax.f32 %v210, 0.0
        %v275 = vmax.f32 %v211, 0.0
        %v276 = vmax.f32 %v212, 0.0
        %v277 = vmax.f32 %v213, 0.0
        %v278 = vmax.f32 %v214, 0.0
        %v279 = vmax.f32 %v215, 0.0
        %v280 = vmax.f32 %v216, 0.0
        %v281 = vmax.f32 %v217, 0.0
        %v282 = vmax.f32 %v218, 0.0
        %v283 = vmax.f32 %v219, 0.0
        %v284 = vmax.f32 %v220, 0.0
        %v285 = vmax.f32 %v221, 0.0
        %v286 = vadd.f32 %v222, 1.0
        %v287 = vlog2.pop %v286
        %v288 = vmul.f32 %v287, 0.6931472
        %v289 = vmul.f32 -0.5, %v222
        %v290 = vadd.f32 %v289, 1.0
        %v291 = vmul.f32 %v290, %v222
        %v292 = vand.u32 2147483647, %v222
        %vm293 = vcmp.lt.f32.partialorder %v292, 0.0004427343
        %v294 = vsel %vm293, %v291, %v288
        %v295 = vadd.f32 %v223, 1.0
        %v296 = vlog2.pop %v295
        %v297 = vmul.f32 %v296, 0.6931472
        %v298 = vmul.f32 -0.5, %v223
        %v299 = vadd.f32 %v298, 1.0
        %v300 = vmul.f32 %v299, %v223
        %v301 = vand.u32 2147483647, %v223
        %vm302 = vcmp.lt.f32.partialorder %v301, 0.0004427343
        %v303 = vsel %vm302, %v300, %v297
        %v304 = vadd.f32 %v224, 1.0
        %v305 = vlog2.pop %v304
        %v306 = vmul.f32 %v305, 0.6931472
        %v307 = vmul.f32 -0.5, %v224
        %v308 = vadd.f32 %v307, 1.0
        %v309 = vmul.f32 %v308, %v224
        %v310 = vand.u32 2147483647, %v224
        %vm311 = vcmp.lt.f32.partialorder %v310, 0.0004427343
        %v312 = vsel %vm311, %v309, %v306
        %v313 = vadd.f32 %v225, 1.0
        %v314 = vlog2.pop %v313
        %v315 = vmul.f32 %v314, 0.6931472
        %v316 = vmul.f32 -0.5, %v225
        %v317 = vadd.f32 %v316, 1.0
        %v318 = vmul.f32 %v317, %v225
        %v319 = vand.u32 2147483647, %v225
        %vm320 = vcmp.lt.f32.partialorder %v319, 0.0004427343
        %v321 = vsel %vm320, %v318, %v315
        %v322 = vadd.f32 %v226, 1.0
        %v323 = vlog2.pop %v322
        %v324 = vmul.f32 %v323, 0.6931472
        %v325 = vmul.f32 -0.5, %v226
        %v326 = vadd.f32 %v325, 1.0
        %v327 = vmul.f32 %v326, %v226
        %v328 = vand.u32 2147483647, %v226
        %vm329 = vcmp.lt.f32.partialorder %v328, 0.0004427343
        %v330 = vsel %vm329, %v327, %v324
        %v331 = vadd.f32 %v227, 1.0
        %v332 = vlog2.pop %v331
        %v333 = vmul.f32 %v332, 0.6931472
        %v334 = vmul.f32 -0.5, %v227
        %v335 = vadd.f32 %v334, 1.0
        %v336 = vmul.f32 %v335, %v227
        %v337 = vand.u32 2147483647, %v227
        %vm338 = vcmp.lt.f32.partialorder %v337, 0.0004427343
        %v339 = vsel %vm338, %v336, %v333
        %v340 = vadd.f32 %v228, 1.0
        %v341 = vlog2.pop %v340
        %v342 = vmul.f32 %v341, 0.6931472
        %v343 = vmul.f32 -0.5, %v228
        %v344 = vadd.f32 %v343, 1.0
        %v345 = vmul.f32 %v344, %v228
        %v346 = vand.u32 2147483647, %v228
        %vm347 = vcmp.lt.f32.partialorder %v346, 0.0004427343
        %v348 = vsel %vm347, %v345, %v342
        %v349 = vadd.f32 %v229, 1.0
        %v350 = vlog2.pop %v349
        %v351 = vmul.f32 %v350, 0.6931472
        %v352 = vmul.f32 -0.5, %v229
        %v353 = vadd.f32 %v352, 1.0
        %v354 = vmul.f32 %v353, %v229
        %v355 = vand.u32 2147483647, %v229
        %vm356 = vcmp.lt.f32.partialorder %v355, 0.0004427343
        %v357 = vsel %vm356, %v354, %v351
        %v358 = vadd.f32 %v230, 1.0
        %v359 = vlog2.pop %v358
        %v360 = vmul.f32 %v359, 0.6931472
        %v361 = vmul.f32 -0.5, %v230
        %v362 = vadd.f32 %v361, 1.0
        %v363 = vmul.f32 %v362, %v230
        %v364 = vand.u32 2147483647, %v230
        %vm365 = vcmp.lt.f32.partialorder %v364, 0.0004427343
        %v366 = vsel %vm365, %v363, %v360
        %v367 = vadd.f32 %v231, 1.0
        %v368 = vlog2.pop %v367
        %v369 = vmul.f32 %v368, 0.6931472
        %v370 = vmul.f32 -0.5, %v231
        %v371 = vadd.f32 %v370, 1.0
        %v372 = vmul.f32 %v371, %v231
        %v373 = vand.u32 2147483647, %v231
        %vm374 = vcmp.lt.f32.partialorder %v373, 0.0004427343
        %v375 = vsel %vm374, %v372, %v369
        %v376 = vadd.f32 %v232, 1.0
        %v377 = vlog2.pop %v376
        %v378 = vmul.f32 %v377, 0.6931472
        %v379 = vmul.f32 -0.5, %v232
        %v380 = vadd.f32 %v379, 1.0
        %v381 = vmul.f32 %v380, %v232
        %v382 = vand.u32 2147483647, %v232
        %vm383 = vcmp.lt.f32.partialorder %v382, 0.0004427343
        %v384 = vsel %vm383, %v381, %v378
        %v385 = vadd.f32 %v233, 1.0
        %v386 = vlog2.pop %v385
        %v387 = vmul.f32 %v386, 0.6931472
        %v388 = vmul.f32 -0.5, %v233
        %v389 = vadd.f32 %v388, 1.0
        %v390 = vmul.f32 %v389, %v233
        %v391 = vand.u32 2147483647, %v233
        %vm392 = vcmp.lt.f32.partialorder %v391, 0.0004427343
        %v393 = vsel %vm392, %v390, %v387
        %v394 = vadd.f32 %v234, 1.0
        %v395 = vlog2.pop %v394
        %v396 = vmul.f32 %v395, 0.6931472
        %v397 = vmul.f32 -0.5, %v234
        %v398 = vadd.f32 %v397, 1.0
        %v399 = vmul.f32 %v398, %v234
        %v400 = vand.u32 2147483647, %v234
        %vm401 = vcmp.lt.f32.partialorder %v400, 0.0004427343
        %v402 = vsel %vm401, %v399, %v396
        %v403 = vadd.f32 %v235, 1.0
        %v404 = vlog2.pop %v403
        %v405 = vmul.f32 %v404, 0.6931472
        %v406 = vmul.f32 -0.5, %v235
        %v407 = vadd.f32 %v406, 1.0
        %v408 = vmul.f32 %v407, %v235
        %v409 = vand.u32 2147483647, %v235
        %vm410 = vcmp.lt.f32.partialorder %v409, 0.0004427343
        %v411 = vsel %vm410, %v408, %v405
        %v412 = vadd.f32 %v236, 1.0
        %v413 = vlog2.pop %v412
        %v414 = vmul.f32 %v413, 0.6931472
        %v415 = vmul.f32 -0.5, %v236
        %v416 = vadd.f32 %v415, 1.0
        %v417 = vmul.f32 %v416, %v236
        %v418 = vand.u32 2147483647, %v236
        %vm419 = vcmp.lt.f32.partialorder %v418, 0.0004427343
        %v420 = vsel %vm419, %v417, %v414
        %v421 = vadd.f32 %v237, 1.0
        %v422 = vlog2.pop %v421
        %v423 = vmul.f32 %v422, 0.6931472
        %v424 = vmul.f32 -0.5, %v237
        %v425 = vadd.f32 %v424, 1.0
        %v426 = vmul.f32 %v425, %v237
        %v427 = vand.u32 2147483647, %v237
        %vm428 = vcmp.lt.f32.partialorder %v427, 0.0004427343
        %v429 = vsel %vm428, %v426, %v423
        %v430 = vadd.f32 %v238, 1.0
        %v431 = vlog2.pop %v430
        %v432 = vmul.f32 %v431, 0.6931472
        %v433 = vmul.f32 -0.5, %v238
        %v434 = vadd.f32 %v433, 1.0
        %v435 = vmul.f32 %v434, %v238
        %v436 = vand.u32 2147483647, %v238
        %vm437 = vcmp.lt.f32.partialorder %v436, 0.0004427343
        %v438 = vsel %vm437, %v435, %v432
        %v439 = vadd.f32 %v239, 1.0
        %v440 = vlog2.pop %v439
        %v441 = vmul.f32 %v440, 0.6931472
        %v442 = vmul.f32 -0.5, %v239
        %v443 = vadd.f32 %v442, 1.0
        %v444 = vmul.f32 %v443, %v239
        %v445 = vand.u32 2147483647, %v239
        %vm446 = vcmp.lt.f32.partialorder %v445, 0.0004427343
        %v447 = vsel %vm446, %v444, %v441
        %v448 = vadd.f32 %v240, 1.0
        %v449 = vlog2.pop %v448
        %v450 = vmul.f32 %v449, 0.6931472
        %v451 = vmul.f32 -0.5, %v240
        %v452 = vadd.f32 %v451, 1.0
        %v453 = vmul.f32 %v452, %v240
        %v454 = vand.u32 2147483647, %v240
        %vm455 = vcmp.lt.f32.partialorder %v454, 0.0004427343
        %v456 = vsel %vm455, %v453, %v450
        %v457 = vadd.f32 %v241, 1.0
        %v458 = vlog2.pop %v457
        %v459 = vmul.f32 %v458, 0.6931472
        %v460 = vmul.f32 -0.5, %v241
        %v461 = vadd.f32 %v460, 1.0
        %v462 = vmul.f32 %v461, %v241
        %v463 = vand.u32 2147483647, %v241
        %vm464 = vcmp.lt.f32.partialorder %v463, 0.0004427343
        %v465 = vsel %vm464, %v462, %v459
        %v466 = vadd.f32 %v242, 1.0
        %v467 = vlog2.pop %v466
        %v468 = vmul.f32 %v467, 0.6931472
        %v469 = vmul.f32 -0.5, %v242
        %v470 = vadd.f32 %v469, 1.0
        %v471 = vmul.f32 %v470, %v242
        %v472 = vand.u32 2147483647, %v242
        %vm473 = vcmp.lt.f32.partialorder %v472, 0.0004427343
        %v474 = vsel %vm473, %v471, %v468
        %v475 = vadd.f32 %v243, 1.0
        %v476 = vlog2.pop %v475
        %v477 = vmul.f32 %v476, 0.6931472
        %v478 = vmul.f32 -0.5, %v243
        %v479 = vadd.f32 %v478, 1.0
        %v480 = vmul.f32 %v479, %v243
        %v481 = vand.u32 2147483647, %v243
        %vm482 = vcmp.lt.f32.partialorder %v481, 0.0004427343
        %v483 = vsel %vm482, %v480, %v477
        %v484 = vadd.f32 %v244, 1.0
        %v485 = vlog2.pop %v484
        %v486 = vmul.f32 %v485, 0.6931472
        %v487 = vmul.f32 -0.5, %v244
        %v488 = vadd.f32 %v487, 1.0
        %v489 = vmul.f32 %v488, %v244
        %v490 = vand.u32 2147483647, %v244
        %vm491 = vcmp.lt.f32.partialorder %v490, 0.0004427343
        %v492 = vsel %vm491, %v489, %v486
        %v493 = vadd.f32 %v245, 1.0
        %v494 = vlog2.pop %v493
        %v495 = vmul.f32 %v494, 0.6931472
        %v496 = vmul.f32 -0.5, %v245
        %v497 = vadd.f32 %v496, 1.0
        %v498 = vmul.f32 %v497, %v245
        %v499 = vand.u32 2147483647, %v245
        %vm500 = vcmp.lt.f32.partialorder %v499, 0.0004427343
        %v501 = vsel %vm500, %v498, %v495
        %v502 = vadd.f32 %v246, 1.0
        %v503 = vlog2.pop %v502
        %v504 = vmul.f32 %v503, 0.6931472
        %v505 = vmul.f32 -0.5, %v246
        %v506 = vadd.f32 %v505, 1.0
        %v507 = vmul.f32 %v506, %v246
        %v508 = vand.u32 2147483647, %v246
        %vm509 = vcmp.lt.f32.partialorder %v508, 0.0004427343
        %v510 = vsel %vm509, %v507, %v504
        %v511 = vadd.f32 %v247, 1.0
        %v512 = vlog2.pop %v511
        %v513 = vmul.f32 %v512, 0.6931472
        %v514 = vmul.f32 -0.5, %v247
        %v515 = vadd.f32 %v514, 1.0
        %v516 = vmul.f32 %v515, %v247
        %v517 = vand.u32 2147483647, %v247
        %vm518 = vcmp.lt.f32.partialorder %v517, 0.0004427343
        %v519 = vsel %vm518, %v516, %v513
        %v520 = vadd.f32 %v248, 1.0
        %v521 = vlog2.pop %v520
        %v522 = vmul.f32 %v521, 0.6931472
        %v523 = vmul.f32 -0.5, %v248
        %v524 = vadd.f32 %v523, 1.0
        %v525 = vmul.f32 %v524, %v248
        %v526 = vand.u32 2147483647, %v248
        %vm527 = vcmp.lt.f32.partialorder %v526, 0.0004427343
        %v528 = vsel %vm527, %v525, %v522
        %v529 = vadd.f32 %v249, 1.0
        %v530 = vlog2.pop %v529
        %v531 = vmul.f32 %v530, 0.6931472
        %v532 = vmul.f32 -0.5, %v249
        %v533 = vadd.f32 %v532, 1.0
        %v534 = vmul.f32 %v533, %v249
        %v535 = vand.u32 2147483647, %v249
        %vm536 = vcmp.lt.f32.partialorder %v535, 0.0004427343
        %v537 = vsel %vm536, %v534, %v531
        %v538 = vadd.f32 %v250, 1.0
        %v539 = vlog2.pop %v538
        %v540 = vmul.f32 %v539, 0.6931472
        %v541 = vmul.f32 -0.5, %v250
        %v542 = vadd.f32 %v541, 1.0
        %v543 = vmul.f32 %v542, %v250
        %v544 = vand.u32 2147483647, %v250
        %vm545 = vcmp.lt.f32.partialorder %v544, 0.0004427343
        %v546 = vsel %vm545, %v543, %v540
        %v547 = vadd.f32 %v251, 1.0
        %v548 = vlog2.pop %v547
        %v549 = vmul.f32 %v548, 0.6931472
        %v550 = vmul.f32 -0.5, %v251
        %v551 = vadd.f32 %v550, 1.0
        %v552 = vmul.f32 %v551, %v251
        %v553 = vand.u32 2147483647, %v251
        %vm554 = vcmp.lt.f32.partialorder %v553, 0.0004427343
        %v555 = vsel %vm554, %v552, %v549
        %v556 = vadd.f32 %v252, 1.0
        %v557 = vlog2.pop %v556
        %v558 = vmul.f32 %v557, 0.6931472
        %v559 = vmul.f32 -0.5, %v252
        %v560 = vadd.f32 %v559, 1.0
        %v561 = vmul.f32 %v560, %v252
        %v562 = vand.u32 2147483647, %v252
        %vm563 = vcmp.lt.f32.partialorder %v562, 0.0004427343
        %v564 = vsel %vm563, %v561, %v558
        %v565 = vadd.f32 %v253, 1.0
        %v566 = vlog2.pop %v565
        %v567 = vmul.f32 %v566, 0.6931472
        %v568 = vmul.f32 -0.5, %v253
        %v569 = vadd.f32 %v568, 1.0
        %v570 = vmul.f32 %v569, %v253
        %v571 = vand.u32 2147483647, %v253
        %vm572 = vcmp.lt.f32.partialorder %v571, 0.0004427343
        %v573 = vsel %vm572, %v570, %v567
        %v574 = vadd.f32 %v254, 1.0
        %v575 = vlog2.pop %v574
        %v576 = vmul.f32 %v575, 0.6931472
        %v577 = vmul.f32 -0.5, %v254
        %v578 = vadd.f32 %v577, 1.0
        %v579 = vmul.f32 %v578, %v254
        %v580 = vand.u32 2147483647, %v254
        %vm581 = vcmp.lt.f32.partialorder %v580, 0.0004427343
        %v582 = vsel %vm581, %v579, %v576
        %v583 = vadd.f32 %v255, 1.0
        %v584 = vlog2.pop %v583
        %v585 = vmul.f32 %v584, 0.6931472
        %v586 = vmul.f32 -0.5, %v255
        %v587 = vadd.f32 %v586, 1.0
        %v588 = vmul.f32 %v587, %v255
        %v589 = vand.u32 2147483647, %v255
        %vm590 = vcmp.lt.f32.partialorder %v589, 0.0004427343
        %v591 = vsel %vm590, %v588, %v585
        %v592 = vadd.f32 %v256, 1.0
        %v593 = vlog2.pop %v592
        %v594 = vmul.f32 %v593, 0.6931472
        %v595 = vmul.f32 -0.5, %v256
        %v596 = vadd.f32 %v595, 1.0
        %v597 = vmul.f32 %v596, %v256
        %v598 = vand.u32 2147483647, %v256
        %vm599 = vcmp.lt.f32.partialorder %v598, 0.0004427343
        %v600 = vsel %vm599, %v597, %v594
        %v601 = vadd.f32 %v257, 1.0
        %v602 = vlog2.pop %v601
        %v603 = vmul.f32 %v602, 0.6931472
        %v604 = vmul.f32 -0.5, %v257
        %v605 = vadd.f32 %v604, 1.0
        %v606 = vmul.f32 %v605, %v257
        %v607 = vand.u32 2147483647, %v257
        %vm608 = vcmp.lt.f32.partialorder %v607, 0.0004427343
        %v609 = vsel %vm608, %v606, %v603
        %v610 = vadd.f32 %v258, 1.0
        %v611 = vlog2.pop %v610
        %v612 = vmul.f32 %v611, 0.6931472
        %v613 = vmul.f32 -0.5, %v258
        %v614 = vadd.f32 %v613, 1.0
        %v615 = vmul.f32 %v614, %v258
        %v616 = vand.u32 2147483647, %v258
        %vm617 = vcmp.lt.f32.partialorder %v616, 0.0004427343
        %v618 = vsel %vm617, %v615, %v612
        %v619 = vadd.f32 %v259, 1.0
        %v620 = vlog2.pop %v619
        %v621 = vmul.f32 %v620, 0.6931472
        %v622 = vmul.f32 -0.5, %v259
        %v623 = vadd.f32 %v622, 1.0
        %v624 = vmul.f32 %v623, %v259
        %v625 = vand.u32 2147483647, %v259
        %vm626 = vcmp.lt.f32.partialorder %v625, 0.0004427343
        %v627 = vsel %vm626, %v624, %v621
        %v628 = vadd.f32 %v260, 1.0
        %v629 = vlog2.pop %v628
        %v630 = vmul.f32 %v629, 0.6931472
        %v631 = vmul.f32 -0.5, %v260
        %v632 = vadd.f32 %v631, 1.0
        %v633 = vmul.f32 %v632, %v260
        %v634 = vand.u32 2147483647, %v260
        %vm635 = vcmp.lt.f32.partialorder %v634, 0.0004427343
        %v636 = vsel %vm635, %v633, %v630
        %v637 = vadd.f32 %v261, 1.0
        %v638 = vlog2.pop %v637
        %v639 = vmul.f32 %v638, 0.6931472
        %v640 = vmul.f32 -0.5, %v261
        %v641 = vadd.f32 %v640, 1.0
        %v642 = vmul.f32 %v641, %v261
        %v643 = vand.u32 2147483647, %v261
        %vm644 = vcmp.lt.f32.partialorder %v643, 0.0004427343
        %v645 = vsel %vm644, %v642, %v639
        %v646 = vadd.f32 %v262, 1.0
        %v647 = vlog2.pop %v646
        %v648 = vmul.f32 %v647, 0.6931472
        %v649 = vmul.f32 -0.5, %v262
        %v650 = vadd.f32 %v649, 1.0
        %v651 = vmul.f32 %v650, %v262
        %v652 = vand.u32 2147483647, %v262
        %vm653 = vcmp.lt.f32.partialorder %v652, 0.0004427343
        %v654 = vsel %vm653, %v651, %v648
        %v655 = vadd.f32 %v263, 1.0
        %v656 = vlog2.pop %v655
        %v657 = vmul.f32 %v656, 0.6931472
        %v658 = vmul.f32 -0.5, %v263
        %v659 = vadd.f32 %v658, 1.0
        %v660 = vmul.f32 %v659, %v263
        %v661 = vand.u32 2147483647, %v263
        %vm662 = vcmp.lt.f32.partialorder %v661, 0.0004427343
        %v663 = vsel %vm662, %v660, %v657
        %v664 = vadd.f32 %v264, 1.0
        %v665 = vlog2.pop %v664
        %v666 = vmul.f32 %v665, 0.6931472
        %v667 = vmul.f32 -0.5, %v264
        %v668 = vadd.f32 %v667, 1.0
        %v669 = vmul.f32 %v668, %v264
        %v670 = vand.u32 2147483647, %v264
        %vm671 = vcmp.lt.f32.partialorder %v670, 0.0004427343
        %v672 = vsel %vm671, %v669, %v666
        %v673 = vadd.f32 %v265, 1.0
        %v674 = vlog2.pop %v673
        %v675 = vmul.f32 %v674, 0.6931472
        %v676 = vmul.f32 -0.5, %v265
        %v677 = vadd.f32 %v676, 1.0
        %v678 = vmul.f32 %v677, %v265
        %v679 = vand.u32 2147483647, %v265
        %vm680 = vcmp.lt.f32.partialorder %v679, 0.0004427343
        %v681 = vsel %vm680, %v678, %v675
        %v682 = vadd.f32 %v266, 1.0
        %v683 = vlog2.pop %v682
        %v684 = vmul.f32 %v683, 0.6931472
        %v685 = vmul.f32 -0.5, %v266
        %v686 = vadd.f32 %v685, 1.0
        %v687 = vmul.f32 %v686, %v266
        %v688 = vand.u32 2147483647, %v266
        %vm689 = vcmp.lt.f32.partialorder %v688, 0.0004427343
        %v690 = vsel %vm689, %v687, %v684
        %v691 = vadd.f32 %v267, 1.0
        %v692 = vlog2.pop %v691
        %v693 = vmul.f32 %v692, 0.6931472
        %v694 = vmul.f32 -0.5, %v267
        %v695 = vadd.f32 %v694, 1.0
        %v696 = vmul.f32 %v695, %v267
        %v697 = vand.u32 2147483647, %v267
        %vm698 = vcmp.lt.f32.partialorder %v697, 0.0004427343
        %v699 = vsel %vm698, %v696, %v693
        %v700 = vadd.f32 %v268, 1.0
        %v701 = vlog2.pop %v700
        %v702 = vmul.f32 %v701, 0.6931472
        %v703 = vmul.f32 -0.5, %v268
        %v704 = vadd.f32 %v703, 1.0
        %v705 = vmul.f32 %v704, %v268
        %v706 = vand.u32 2147483647, %v268
        %vm707 = vcmp.lt.f32.partialorder %v706, 0.0004427343
        %v708 = vsel %vm707, %v705, %v702
        %v709 = vadd.f32 %v269, 1.0
        %v710 = vlog2.pop %v709
        %v711 = vmul.f32 %v710, 0.6931472
        %v712 = vmul.f32 -0.5, %v269
        %v713 = vadd.f32 %v712, 1.0
        %v714 = vmul.f32 %v713, %v269
        %v715 = vand.u32 2147483647, %v269
        %vm716 = vcmp.lt.f32.partialorder %v715, 0.0004427343
        %v717 = vsel %vm716, %v714, %v711
        %v718 = vadd.f32 %v270, 1.0
        %v719 = vlog2.pop %v718
        %v720 = vmul.f32 %v719, 0.6931472
        %v721 = vmul.f32 -0.5, %v270
        %v722 = vadd.f32 %v721, 1.0
        %v723 = vmul.f32 %v722, %v270
        %v724 = vand.u32 2147483647, %v270
        %vm725 = vcmp.lt.f32.partialorder %v724, 0.0004427343
        %v726 = vsel %vm725, %v723, %v720
        %v727 = vadd.f32 %v271, 1.0
        %v728 = vlog2.pop %v727
        %v729 = vmul.f32 %v728, 0.6931472
        %v730 = vmul.f32 -0.5, %v271
        %v731 = vadd.f32 %v730, 1.0
        %v732 = vmul.f32 %v731, %v271
        %v733 = vand.u32 2147483647, %v271
        %vm734 = vcmp.lt.f32.partialorder %v733, 0.0004427343
        %v735 = vsel %vm734, %v732, %v729
        %v736 = vadd.f32 %v272, 1.0
        %v737 = vlog2.pop %v736
        %v738 = vmul.f32 %v737, 0.6931472
        %v739 = vmul.f32 -0.5, %v272
        %v740 = vadd.f32 %v739, 1.0
        %v741 = vmul.f32 %v740, %v272
        %v742 = vand.u32 2147483647, %v272
        %vm743 = vcmp.lt.f32.partialorder %v742, 0.0004427343
        %v744 = vsel %vm743, %v741, %v738
        %v745 = vadd.f32 %v273, 1.0
        %v746 = vlog2.pop %v745
        %v747 = vmul.f32 %v746, 0.6931472
        %v748 = vmul.f32 -0.5, %v273
        %v749 = vadd.f32 %v748, 1.0
        %v750 = vmul.f32 %v749, %v273
        %v751 = vand.u32 2147483647, %v273
        %vm752 = vcmp.lt.f32.partialorder %v751, 0.0004427343
        %v753 = vsel %vm752, %v750, %v747
        %v754 = vadd.f32 %v274, 1.0
        %v755 = vlog2.pop %v754
        %v756 = vmul.f32 %v755, 0.6931472
        %v757 = vmul.f32 -0.5, %v274
        %v758 = vadd.f32 %v757, 1.0
        %v759 = vmul.f32 %v758, %v274
        %v760 = vand.u32 2147483647, %v274
        %vm761 = vcmp.lt.f32.partialorder %v760, 0.0004427343
        %v762 = vsel %vm761, %v759, %v756
        %v763 = vadd.f32 %v275, 1.0
        %v764 = vlog2.pop %v763
        %v765 = vmul.f32 %v764, 0.6931472
        %v766 = vmul.f32 -0.5, %v275
        %v767 = vadd.f32 %v766, 1.0
        %v768 = vmul.f32 %v767, %v275
        %v769 = vand.u32 2147483647, %v275
        %vm770 = vcmp.lt.f32.partialorder %v769, 0.0004427343
        %v771 = vsel %vm770, %v768, %v765
        %v772 = vadd.f32 %v276, 1.0
        %v773 = vlog2.pop %v772
        %v774 = vmul.f32 %v773, 0.6931472
        %v775 = vmul.f32 -0.5, %v276
        %v776 = vadd.f32 %v775, 1.0
        %v777 = vmul.f32 %v776, %v276
        %v778 = vand.u32 2147483647, %v276
        %vm779 = vcmp.lt.f32.partialorder %v778, 0.0004427343
        %v780 = vsel %vm779, %v777, %v774
        %v781 = vadd.f32 %v277, 1.0
        %v782 = vlog2.pop %v781
        %v783 = vmul.f32 %v782, 0.6931472
        %v784 = vmul.f32 -0.5, %v277
        %v785 = vadd.f32 %v784, 1.0
        %v786 = vmul.f32 %v785, %v277
        %v787 = vand.u32 2147483647, %v277
        %vm788 = vcmp.lt.f32.partialorder %v787, 0.0004427343
        %v789 = vsel %vm788, %v786, %v783
        %v790 = vadd.f32 %v278, 1.0
        %v791 = vlog2.pop %v790
        %v792 = vmul.f32 %v791, 0.6931472
        %v793 = vmul.f32 -0.5, %v278
        %v794 = vadd.f32 %v793, 1.0
        %v795 = vmul.f32 %v794, %v278
        %v796 = vand.u32 2147483647, %v278
        %vm797 = vcmp.lt.f32.partialorder %v796, 0.0004427343
        %v798 = vsel %vm797, %v795, %v792
        %v799 = vadd.f32 %v279, 1.0
        %v800 = vlog2.pop %v799
        %v801 = vmul.f32 %v800, 0.6931472
        %v802 = vmul.f32 -0.5, %v279
        %v803 = vadd.f32 %v802, 1.0
        %v804 = vmul.f32 %v803, %v279
        %v805 = vand.u32 2147483647, %v279
        %vm806 = vcmp.lt.f32.partialorder %v805, 0.0004427343
        %v807 = vsel %vm806, %v804, %v801
        %v808 = vadd.f32 %v280, 1.0
        %v809 = vlog2.pop %v808
        %v810 = vmul.f32 %v809, 0.6931472
        %v811 = vmul.f32 -0.5, %v280
        %v812 = vadd.f32 %v811, 1.0
        %v813 = vmul.f32 %v812, %v280
        %v814 = vand.u32 2147483647, %v280
        %vm815 = vcmp.lt.f32.partialorder %v814, 0.0004427343
        %v816 = vsel %vm815, %v813, %v810
        %v817 = vadd.f32 %v281, 1.0
        %v818 = vlog2.pop %v817
        %v819 = vmul.f32 %v818, 0.6931472
        %v820 = vmul.f32 -0.5, %v281
        %v821 = vadd.f32 %v820, 1.0
        %v822 = vmul.f32 %v821, %v281
        %v823 = vand.u32 2147483647, %v281
        %vm824 = vcmp.lt.f32.partialorder %v823, 0.0004427343
        %v825 = vsel %vm824, %v822, %v819
        %v826 = vadd.f32 %v282, 1.0
        %v827 = vlog2.pop %v826
        %v828 = vmul.f32 %v827, 0.6931472
        %v829 = vmul.f32 -0.5, %v282
        %v830 = vadd.f32 %v829, 1.0
        %v831 = vmul.f32 %v830, %v282
        %v832 = vand.u32 2147483647, %v282
        %vm833 = vcmp.lt.f32.partialorder %v832, 0.0004427343
        %v834 = vsel %vm833, %v831, %v828
        %v835 = vadd.f32 %v283, 1.0
        %v836 = vlog2.pop %v835
        %v837 = vmul.f32 %v836, 0.6931472
        %v838 = vmul.f32 -0.5, %v283
        %v839 = vadd.f32 %v838, 1.0
        %v840 = vmul.f32 %v839, %v283
        %v841 = vand.u32 2147483647, %v283
        %vm842 = vcmp.lt.f32.partialorder %v841, 0.0004427343
        %v843 = vsel %vm842, %v840, %v837
        %v844 = vadd.f32 %v284, 1.0
        %v845 = vlog2.pop %v844
        %v846 = vmul.f32 %v845, 0.6931472
        %v847 = vmul.f32 -0.5, %v284
        %v848 = vadd.f32 %v847, 1.0
        %v849 = vmul.f32 %v848, %v284
        %v850 = vand.u32 2147483647, %v284
        %vm851 = vcmp.lt.f32.partialorder %v850, 0.0004427343
        %v852 = vsel %vm851, %v849, %v846
        %v853 = vadd.f32 %v285, 1.0
        %v854 = vlog2.pop %v853
        %v855 = vmul.f32 %v854, 0.6931472
        %v856 = vmul.f32 -0.5, %v285
        %v857 = vadd.f32 %v856, 1.0
        %v858 = vmul.f32 %v857, %v285
        %v859 = vand.u32 2147483647, %v285
        %vm860 = vcmp.lt.f32.partialorder %v859, 0.0004427343
        %v861 = vsel %vm860, %v858, %v855
        %862 = vst [vmem:[%s153] sm:$0xff] %v294
        %863 = vst [vmem:[%s153 + $0x8] sm:$0xff] %v303
        %864 = vst [vmem:[%s153 + $0x10] sm:$0xff] %v312
        %865 = vst [vmem:[%s153 + $0x18] sm:$0xff] %v321
        %866 = vst [vmem:[%s153 + $0x20] sm:$0xff] %v330
        %867 = vst [vmem:[%s153 + $0x28] sm:$0xff] %v339
        %868 = vst [vmem:[%s153 + $0x30] sm:$0xff] %v348
        %869 = vst [vmem:[%s153 + $0x38] sm:$0xff] %v357
        %870 = vst [vmem:[%s153 + $0x40] sm:$0xff] %v366
        %871 = vst [vmem:[%s153 + $0x48] sm:$0xff] %v375
        %872 = vst [vmem:[%s153 + $0x50] sm:$0xff] %v384
        %873 = vst [vmem:[%s153 + $0x58] sm:$0xff] %v393
        %874 = vst [vmem:[%s153 + $0x60] sm:$0xff] %v402
        %875 = vst [vmem:[%s153 + $0x68] sm:$0xff] %v411
        %876 = vst [vmem:[%s153 + $0x70] sm:$0xff] %v420
        %877 = vst [vmem:[%s153 + $0x78] sm:$0xff] %v429
        %878 = vst [vmem:[%s153 + $0x80] sm:$0xff] %v438
        %879 = vst [vmem:[%s153 + $0x88] sm:$0xff] %v447
        %880 = vst [vmem:[%s153 + $0x90] sm:$0xff] %v456
        %881 = vst [vmem:[%s153 + $0x98] sm:$0xff] %v465
        %882 = vst [vmem:[%s153 + $0xa0] sm:$0xff] %v474
        %883 = vst [vmem:[%s153 + $0xa8] sm:$0xff] %v483
        %884 = vst [vmem:[%s153 + $0xb0] sm:$0xff] %v492
        %885 = vst [vmem:[%s153 + $0xb8] sm:$0xff] %v501
        %886 = vst [vmem:[%s153 + $0xc0] sm:$0xff] %v510
        %887 = vst [vmem:[%s153 + $0xc8] sm:$0xff] %v519
        %888 = vst [vmem:[%s153 + $0xd0] sm:$0xff] %v528
        %889 = vst [vmem:[%s153 + $0xd8] sm:$0xff] %v537
        %890 = vst [vmem:[%s153 + $0xe0] sm:$0xff] %v546
        %891 = vst [vmem:[%s153 + $0xe8] sm:$0xff] %v555
        %892 = vst [vmem:[%s153 + $0xf0] sm:$0xff] %v564
        %893 = vst [vmem:[%s153 + $0xf8] sm:$0xff] %v573
        %894 = vst [vmem:[%s153 + $0x100] sm:$0xff] %v582
        %895 = vst [vmem:[%s153 + $0x108] sm:$0xff] %v591
        %896 = vst [vmem:[%s153 + $0x110] sm:$0xff] %v600
        %897 = vst [vmem:[%s153 + $0x118] sm:$0xff] %v609
        %898 = vst [vmem:[%s153 + $0x120] sm:$0xff] %v618
        %899 = vst [vmem:[%s153 + $0x128] sm:$0xff] %v627
        %900 = vst [vmem:[%s153 + $0x130] sm:$0xff] %v636
        %901 = vst [vmem:[%s153 + $0x138] sm:$0xff] %v645
        %902 = vst [vmem:[%s153 + $0x140] sm:$0xff] %v654
        %903 = vst [vmem:[%s153 + $0x148] sm:$0xff] %v663
        %904 = vst [vmem:[%s153 + $0x150] sm:$0xff] %v672
        %905 = vst [vmem:[%s153 + $0x158] sm:$0xff] %v681
        %906 = vst [vmem:[%s153 + $0x160] sm:$0xff] %v690
        %907 = vst [vmem:[%s153 + $0x168] sm:$0xff] %v699
        %908 = vst [vmem:[%s153 + $0x170] sm:$0xff] %v708
        %909 = vst [vmem:[%s153 + $0x178] sm:$0xff] %v717
        %910 = vst [vmem:[%s153 + $0x180] sm:$0xff] %v726
        %911 = vst [vmem:[%s153 + $0x188] sm:$0xff] %v735
        %912 = vst [vmem:[%s153 + $0x190] sm:$0xff] %v744
        %913 = vst [vmem:[%s153 + $0x198] sm:$0xff] %v753
        %914 = vst [vmem:[%s153 + $0x1a0] sm:$0xff] %v762
        %915 = vst [vmem:[%s153 + $0x1a8] sm:$0xff] %v771
        %916 = vst [vmem:[%s153 + $0x1b0] sm:$0xff] %v780
        %917 = vst [vmem:[%s153 + $0x1b8] sm:$0xff] %v789
        %918 = vst [vmem:[%s153 + $0x1c0] sm:$0xff] %v798
        %919 = vst [vmem:[%s153 + $0x1c8] sm:$0xff] %v807
        %920 = vst [vmem:[%s153 + $0x1d0] sm:$0xff] %v816
        %921 = vst [vmem:[%s153 + $0x1d8] sm:$0xff] %v825
        %922 = vst [vmem:[%s153 + $0x1e0] sm:$0xff] %v834
        %923 = vst [vmem:[%s153 + $0x1e8] sm:$0xff] %v843
        %924 = vst [vmem:[%s153 + $0x1f0] sm:$0xff] %v852
        %925 = vst [vmem:[%s153 + $0x1f8] sm:$0xff] %v861
        %s926 = sand.u32 %s68, 1
        %s927 = scalar_lea.sflag [#allocation4], %s926
        %s928 = sand.u32 %s68, 1
        %s929 = smul.addr %s928, 512
        %s930 = scalar_lea.vmem [#allocation5], %s929
        // Predicated region
        $region29: #{tpu_custom_call.1} parent=23 // pred_check
          %p931 = pneg %p78
        $region30: #{tpu_custom_call.1} parent=23 // pred_check_branch
          %933 = sbr.rel (%p931) target = $region32
        $region31: #{tpu_custom_call.1} parent=23 // pred_region
          %s934 = smul.u32 8, %s22
          %s935 = smul.u32 8, %s23
          %s937 = ssub.s32 8192, 8192
          %938 = vsyncadd %s927, %s937
          %s939 = smul.addr %s934, 8
          %s940 = sadd.s32 %s935, %s939
          %s941 = smul.addr %s940, 128
          %s942 = scalar_lea.hbm %s1, %s941
          %s943 = sshll.u32 %s930, 4
          %s944 = int_to_ptr.vmem [resolvable:$true] %s943
          %949 = dma.vmem_to_hbm [thread:$0]  %s944, 8192, %s942, %s927, 1024, 1024, 64
        $region32: #{tpu_custom_call.1} parent=23 // pred_fallthru
          _
      $region24: #{tpu_custom_call.1} parent=5 // pred_fallthru
        _
      %p950 = scmp.le.s32.totalorder 2, %s13
      // Predicated region
      $region33: #{tpu_custom_call.1} parent=5 // pred_check
        %p951 = pneg %p950
      $region34: #{tpu_custom_call.1} parent=5 // pred_check_branch
        %953 = sbr.rel (%p951) target = $region36
      $region35: #{tpu_custom_call.1} parent=5 // pred_region
        %s954 = ssub.s32 %s13, 2
        // Predicated region
        $region37: #{tpu_custom_call.1} parent=35 // pred_check
          %p955 = pneg %p84
        $region38: #{tpu_custom_call.1} parent=35 // pred_check_branch
          %957 = sbr.rel (%p955) target = $region40
        $region39: #{tpu_custom_call.1} parent=35 // pred_region
          %s958 = sand.u32 %s69, 1
          %s959 = scalar_lea.sflag [#allocation4], %s958
          %s960 = sand.u32 %s69, 1
          %s961 = smul.addr %s960, 512
          %s962 = scalar_lea.vmem [#allocation5], %s961
          %963 = dma.done %s959, 8192
        $region40: #{tpu_custom_call.1} parent=35 // pred_fallthru
          _
      $region36: #{tpu_custom_call.1} parent=5 // pred_fallthru
        _
    $region6: #{tpu_custom_call.1} parent=1 // loop_footer
      %s17 = sadd.s32 1, %s13
    $region7: #{tpu_custom_call.1} parent=1 // loop_footer_branch
      %12 = sbr.rel target = $region3
    $region8: #{tpu_custom_call.1} parent=1 // loop_exit
      _
    %964 = vsyncpa [#allocation3], 1
    %s965 = scalar_lea.sflag [#allocation3], 1
    %966 = vsyncpa %s965, 1
    %967 = vsyncpa [#allocation4], 1
    %s968 = scalar_lea.sflag [#allocation4], 1
    %969 = vsyncpa %s968, 1

</llo_original>
